<compile_context>
chip_gen: v6e
topology: v6e:2x2x1
jax: 0.10.0
libtpu: 0.0.40
codegen_flags: <defaults>
</compile_context>

<pallas_src>
from functools import partial

import jax
import jax.numpy as jnp
from jax import lax
from jax.experimental import pallas as pl
from jax.experimental.pallas import tpu as pltpu

OUTPUT_DIM = 16          # nn.Upsample target size (the module's output_dim)
K2, P2 = 5, 2            # ConvTranspose1d(1, 8, 5, padding=2)
K1, P1 = 9, 4            # ConvTranspose1d(8, 4, 9, padding=4)
KR, PR = 1, 0            # ConvTranspose1d(4, 1, 1)
Q2 = K2 - 1 - P2         # equivalent correlation padding = 2
Q1 = K1 - 1 - P1         # equivalent correlation padding = 4

# Max batch rows per tile.  Per-tile VMEM (double-buffered, f32):
#   (Lin + Lout) * 4 B * 32768 * 2  ~= 6 MiB  -> fits every generation's
#   default scoped VMEM (v5e 16 MiB, v6e/v7x 32 MiB) with large headroom.
MAX_BATCH_TILE = 32768


# ----------------------------- Pallas kernel ----------------------------------
def decoder_kernel(x_ref, w_ref, b_ref, o_ref):
    """One batch tile per grid step, batch on the sublane axis.

    x_ref : (b_tile, Lin)    inputs in natural (B, Lin) layout
    w_ref : (Lout, Lin)      composite decoder matrix
    b_ref : (1, Lout)        composite bias
    o_ref : (b_tile, Lout)   outputs in natural (B, Lout) layout
    """
    o_ref[...] = (
        lax.dot_general(
            x_ref[...], w_ref[...],
            dimension_numbers=(((1,), (1,)), ((), ())),   # contract Lin dims
            preferred_element_type=jnp.float32,
        )
        + b_ref[...]
    )


# ------------------------- composite affine map (glue) ------------------------
def _linear_chain(xb, params, lin, output_dim, use_bias):
    """Apply upsample + 3 stride-1 ConvTranspose1d layers to a batch of
    length-`lin` vectors.  Pure JAX; used only to build W_eff / b_eff and as
    the correctness reference."""
    w2, b2, w1, b1, wr, br = params
    h = xb.reshape(xb.shape[0], 1, lin).astype(jnp.float32)

    # nearest upsample to output_dim
    src = (jnp.arange(output_dim) * lin) // output_dim
    h = h[:, :, src]                                     # (N, 1, Lout)

    def corr(h, w, b, q):
        # stride-1 ConvTranspose1d == correlation with flipped kernel, pad q
        wp = jnp.transpose(w[:, :, ::-1], (2, 1, 0)).astype(jnp.float32)  # (K,Cout,Cin)
        K = wp.shape[0]
        L = h.shape[-1]
        hp = jnp.pad(h, ((0, 0), (0, 0), (q, q)))
        y = jnp.zeros((h.shape[0], wp.shape[1], L), jnp.float32)
        for k in range(K):
            y = y + jnp.einsum('oc,bcl->bol', wp[k], hp[:, :, k:k + L])
        if use_bias:
            y = y + b.reshape(1, -1, 1).astype(jnp.float32)
        return y

    h = corr(h, w2, b2, Q2)
    h = corr(h, w1, b1, Q1)
    h = corr(h, wr, br, PR)
    return h.reshape(xb.shape[0], output_dim)            # (N, Lout)


def _composite_affine(params, lin, output_dim):
    """Fold upsample + all ConvTranspose layers into (W_eff, b_eff)."""
    b_eff = _linear_chain(jnp.zeros((1, lin), jnp.float32),
                          params, lin, output_dim, use_bias=True)[0]      # (Lout,)
    cols = _linear_chain(jnp.eye(lin, dtype=jnp.float32),
                         params, lin, output_dim, use_bias=False)         # (lin, Lout)
    w_eff = cols.T                                                        # (Lout, lin)
    return w_eff, b_eff.reshape(1, output_dim)


# ----------------------------- tiling heuristic --------------------------------
def _pick_batch_tile(batch_size):
    """Batch tile (multiple of 8 sublanes), aiming for >=2 grid steps so v7x
    megacore can split the 'parallel' batch axis, capped at MAX_BATCH_TILE so
    double-buffered tiles stay well inside every chip's scoped VMEM."""
    n_steps = max(2, pl.cdiv(batch_size, MAX_BATCH_TILE))
    b_tile = pl.cdiv(batch_size, n_steps)
    b_tile = max(8, pl.cdiv(b_tile, 8) * 8)              # sublane multiple
    b_pad = pl.cdiv(batch_size, b_tile) * b_tile
    return b_tile, b_pad


# ------------------------------- forward --------------------------------------
def _decoder_pallas(x2, w_eff, b_eff, output_dim):
    """x2: (B, Lin) f32  ->  (B, Lout, 1) f32 via one Pallas matmul kernel."""
    batch_size, lin = x2.shape
    b_tile, b_pad = _pick_batch_tile(batch_size)
    if b_pad != batch_size:
        # zero rows only produce bias-only garbage, sliced off below
        x2 = jnp.pad(x2, ((0, b_pad - batch_size), (0, 0)))

    grid = (b_pad // b_tile,)
    flops = 2 * lin * output_dim * b_pad
    bytes_accessed = 4 * (lin + output_dim) * b_pad + 4 * (lin + 1) * output_dim

    y = pl.pallas_call(
        decoder_kernel,
        out_shape=jax.ShapeDtypeStruct((b_pad, output_dim), jnp.float32),
        grid=grid,
        in_specs=[
            pl.BlockSpec((b_tile, lin), lambda i: (i, 0)),        # x tile
            pl.BlockSpec((output_dim, lin), lambda i: (0, 0)),    # W_eff (full)
            pl.BlockSpec((1, output_dim), lambda i: (0, 0)),      # b_eff (full)
        ],
        out_specs=pl.BlockSpec((b_tile, output_dim), lambda i: (i, 0)),
        compiler_params=pltpu.CompilerParams(
            dimension_semantics=("parallel",)),
        cost_estimate=pl.CostEstimate(flops=flops, transcendentals=0,
                                      bytes_accessed=bytes_accessed),
    )(x2, w_eff, b_eff)

    # (B_pad, Lout) -> (B, Lout, 1), same element order as torch.reshape
    return y[:batch_size].reshape(batch_size, output_dim, 1)


def make_decoder(params, latent_len, output_dim=OUTPUT_DIM):
    """Precompute W_eff / b_eff once for this parameter set and return a
    jitted apply(x) -> (B, output_dim, 1)."""
    w_eff, b_eff = _composite_affine(params, latent_len, output_dim)
    w_eff = jax.device_put(w_eff)
    b_eff = jax.device_put(b_eff)

    @jax.jit
    def apply(x):
        batch_size = x.shape[0]
        x2 = x.reshape(batch_size, -1).astype(jnp.float32)
        return _decoder_pallas(x2, w_eff, b_eff, output_dim)

    return apply


def decoder_forward(x, params, batch_size, output_dim=OUTPUT_DIM):
    """Convenience one-shot path (derives W_eff/b_eff each call).  Prefer
    make_decoder() when calling repeatedly with fixed params."""
    x2 = x.reshape(batch_size, -1).astype(jnp.float32)
    w_eff, b_eff = _composite_affine(params, x2.shape[-1], output_dim)
    return _decoder_pallas(x2, w_eff, b_eff, output_dim)


# ---------------------------- pure-JAX reference ------------------------------
def decoder_ref(x, params, batch_size, output_dim=OUTPUT_DIM):
    x2 = x.reshape(batch_size, -1).astype(jnp.float32)
    lin = x2.shape[-1]
    out = _linear_chain(x2, params, lin, output_dim, use_bias=True)
    return out.reshape(batch_size, output_dim, 1)


if __name__ == "__main__":
    key = jax.random.PRNGKey(0)
    ks = jax.random.split(key, 8)

    latent_len = 8                                  # x.reshape(B, 1, -1) -> (B, 1, 8)

    # ConvTranspose1d params: weight (Cin, Cout, K), bias (Cout,)
    w2 = jax.random.normal(ks[1], (1, 8, K2), jnp.float32) * 0.30
    b2 = jax.random.normal(ks[2], (8,), jnp.float32) * 0.10
    w1 = jax.random.normal(ks[3], (8, 4, K1), jnp.float32) * 0.15
    b1 = jax.random.normal(ks[4], (4,), jnp.float32) * 0.10
    wr = jax.random.normal(ks[5], (4, 1, KR), jnp.float32) * 0.50
    br = jax.random.normal(ks[6], (1,), jnp.float32) * 0.10
    params = (w2, b2, w1, b1, wr, br)

    # Precompute the composite affine map once; jit the apply path.
    decoder = make_decoder(params, latent_len, OUTPUT_DIM)

    # small-batch check
    batch_size = 2
    x = jax.random.normal(ks[0], (batch_size, latent_len), jnp.float32)
    out = jax.block_until_ready(decoder(x))
    assert out.shape == (batch_size, OUTPUT_DIM, 1), out.shape
    ref = jax.block_until_ready(decoder_ref(x, params, batch_size))
    assert bool(jnp.allclose(out, ref, atol=1e-4, rtol=1e-4)), (
        f"max abs err = {float(jnp.max(jnp.abs(out - ref)))}")

    # larger batch: exercises multiple grid steps + the padding path
    batch_size2 = 260
    x2 = jax.random.normal(ks[7], (batch_size2, latent_len), jnp.float32)
    out2 = jax.block_until_ready(decoder(x2))
    ref2 = jax.block_until_ready(decoder_ref(x2, params, batch_size2))
    assert out2.shape == (batch_size2, OUTPUT_DIM, 1), out2.shape
    assert bool(jnp.allclose(out2, ref2, atol=1e-4, rtol=1e-4)), (
        f"max abs err = {float(jnp.max(jnp.abs(out2 - ref2)))}")

    # convenience (non-factory) path still works
    out3 = jax.block_until_ready(decoder_forward(x, params, batch_size))
    assert bool(jnp.allclose(out3, ref, atol=1e-4, rtol=1e-4))

    print("KERNEL_OK")
</pallas_src>

<mosaic_0001>
module attributes {stable_mosaic.version = 11 : i64} {
  func.func @decoder_kernel(%arg0: i32, %arg1: memref<8x8xf32, #tpu.memory_space<vmem>>, %arg2: memref<16x8xf32, #tpu.memory_space<vmem>>, %arg3: memref<1x16xf32, #tpu.memory_space<vmem>>, %arg4: memref<8x16xf32, #tpu.memory_space<vmem>>) attributes {dimension_semantics = [#tpu.dimension_semantics<parallel>], iteration_bounds = array<i64: 1>, scalar_prefetch = 0 : i64, scratch_operands = 0 : i64, tpu.core_type = #tpu.core_type<tc>, window_params = [{transform_indices = @transform_0, window_bounds = array<i64: 8, 8>}, {pipeline_mode = #tpu.pipeline_mode<synchronous>, transform_indices = @transform_1, window_bounds = array<i64: 16, 8>}, {pipeline_mode = #tpu.pipeline_mode<synchronous>, transform_indices = @transform_2, window_bounds = array<i64: 1, 16>}, {transform_indices = @transform_3, window_bounds = array<i64: 8, 16>}]} {
    %c0 = arith.constant 0 : index
    %c0_0 = arith.constant 0 : index
    %0 = vector.load %arg1[%c0, %c0_0] : memref<8x8xf32, #tpu.memory_space<vmem>>, vector<8x8xf32>
    %c0_1 = arith.constant 0 : index
    %c0_2 = arith.constant 0 : index
    %1 = vector.load %arg2[%c0_1, %c0_2] : memref<16x8xf32, #tpu.memory_space<vmem>>, vector<16x8xf32>
    %cst = arith.constant dense<0.000000e+00> : vector<8x16xf32>
    %2 = tpu.matmul %0, %1, %cst {dimension_numbers = #tpu.dot_dimension_numbers<[1], [1], [0], [0], [0, 0, 1, 0], [], []>} : vector<8x8xf32>, vector<16x8xf32>, vector<8x16xf32> -> vector<8x16xf32>
    %c0_3 = arith.constant 0 : index
    %c0_4 = arith.constant 0 : index
    %3 = vector.load %arg3[%c0_3, %c0_4] : memref<1x16xf32, #tpu.memory_space<vmem>>, vector<1x16xf32>
    %4 = vector.broadcast %3 : vector<1x16xf32> to vector<8x16xf32>
    %5 = arith.addf %2, %4 : vector<8x16xf32>
    %c0_5 = arith.constant 0 : index
    %c0_6 = arith.constant 0 : index
    %6 = vector.load %arg4[%c0_5, %c0_6] : memref<8x16xf32, #tpu.memory_space<vmem>>, vector<8x16xf32>
    tpu.vector_store %arg4[%c0_5, %c0_6], %5 {strides = array<i32>} : memref<8x16xf32, #tpu.memory_space<vmem>>, vector<8x16xf32>,
    return
  }
  func.func @transform_0(%arg0: i32) -> (i32, i32) {
    %c0_i32 = arith.constant 0 : i32
    %c0_i32_0 = arith.constant 0 : i32
    return %arg0, %c0_i32 : i32, i32
  }
  func.func @transform_1(%arg0: i32) -> (i32, i32) {
    %c0_i32 = arith.constant 0 : i32
    %c0_i32_0 = arith.constant 0 : i32
    %c0_i32_1 = arith.constant 0 : i32
    return %c0_i32, %c0_i32_0 : i32, i32
  }
  func.func @transform_2(%arg0: i32) -> (i32, i32) {
    %c0_i32 = arith.constant 0 : i32
    %c0_i32_0 = arith.constant 0 : i32
    %c0_i32_1 = arith.constant 0 : i32
    return %c0_i32, %c0_i32_0 : i32, i32
  }
  func.func @transform_3(%arg0: i32) -> (i32, i32) {
    %c0_i32 = arith.constant 0 : i32
    %c0_i32_0 = arith.constant 0 : i32
    return %arg0, %c0_i32 : i32, i32
  }
}

</mosaic_0001>

<llo_original>
// kernel: apply.1
$region0: #{apply.1}
  #allocation0 [shape = 'u32[]', space=smem, size = 0x4, offset = 0x4, fixed_abs, tag = 'smem constant byte address 0x4 - core index']
  #allocation1 [shape = 'u32[144,128]{1,0:T(1,128)}', space=vmem, size = 0x12000, scoped, tag = 'internal scratch']
  %s0 = inlined_call_operand.vmem [shape: f32[8,8], index: 0, kind: input, shape index: {}]
  %s1 = inlined_call_operand.hbm [shape: f32[16,8], index: 1, kind: input, shape index: {}]
  %s2 = inlined_call_operand.vmem [shape: f32[1,16], index: 2, kind: input, shape index: {}]
  %s3 = inlined_call_operand.vmem [shape: f32[8,16], index: 3, kind: output, shape index: {}]
  %s4 = sld [smem:[#allocation0]]
  $region26: #{apply.1} parent=0
    _
  %s6 = ssub.s32 1, %s4
  %s7 = scalar_select 0, %s6, %s4
  $region1: #{apply.1} parent=0
    #allocation2 [shape = 'u8[8192]{0}', space=vmem, size = 0x2000, scoped, tag = 'input window, operand 1, single buffered']
    #allocation3 [shape = 's32[1]{0}', space=sflag, size = 0x4, scoped, tag = 'scoped memory for apply.1']
    %8 = vsyncpa [#allocation3], 0
    // Predicated region
    $region2: #{apply.1} parent=1 // pred_check
      _
    $region3: #{apply.1} parent=1 // pred_check_branch
      %10 = sbr.rel (0) target = $region5
    $region4: #{apply.1} parent=1 // pred_region
      _
    $region5: #{apply.1} parent=1 // pred_fallthru
      _
    // Predicated region
    $region6: #{apply.1} parent=1 // pred_check
      _
    $region7: #{apply.1} parent=1 // pred_check_branch
      %12 = sbr.rel (0) target = $region9
    $region8: #{apply.1} parent=1 // pred_region
      %s14 = ssub.s32 256, 256
      %15 = vsyncadd [#allocation3], %s14
      %s16 = sshll.u32 [#allocation2], 4
      %s17 = int_to_ptr.vmem [resolvable:$true] %s16
      %22 = dma.hbm_to_vmem [thread:$0]  %s1, 256, %s17, [#allocation3], 128, 128, 8
    $region9: #{apply.1} parent=1 // pred_fallthru
      _
    // Predicated region
    $region10: #{apply.1} parent=1 // pred_check
      _
    $region11: #{apply.1} parent=1 // pred_check_branch
      %24 = sbr.rel (0) target = $region13
    $region12: #{apply.1} parent=1 // pred_region
      _
    $region13: #{apply.1} parent=1 // pred_fallthru
      _
    // Predicated region
    $region14: #{apply.1} parent=1 // pred_check
      _
    $region15: #{apply.1} parent=1 // pred_check_branch
      %26 = sbr.rel (0) target = $region17
    $region16: #{apply.1} parent=1 // pred_region
      %27 = dma.done [#allocation3], 256
    $region17: #{apply.1} parent=1 // pred_fallthru
      _
    %v28 = vld [vmem:[%s0] sm:$0xff]
    %v29 = vld [vmem:[#allocation2] sm:$0xff]
    %v30 = vld [vmem:[#allocation2 + $0x8] sm:$0xff]
    %v31 = vld [vmem:[%s2] sm:$0x1]
    %v33 = vlaneseq
    %v34 = vshrl.u32 %v33, 7
    %v35 = vsub.s32 0, %v34
    %v36 = vrot.slane %v31, %v35
    %vm38 = vcmask 64512
    %v40 = vsel %vm38, %v28, 0
    %v43 = vsel %vm38, %v29, 0
    %v46 = vsel %vm38, %v30, 0
    %48 = vmatprep.subr.mxu0 0.0
    %49 = vmatpush1.xpose.msra.mxu0 0.0
    %50 = vmatprep.subr.mxu0 0.0
    %51 = vmatpush1.xpose.msra.mxu0 0.0
    %52 = vmatprep.subr.mxu0 0.0
    %53 = vmatpush1.xpose.msra.mxu0 0.0
    %54 = vmatprep.subr.mxu0 0.0
    %55 = vmatpush1.xpose.msra.mxu0 0.0
    %56 = vmatprep.subr.mxu0 0.0
    %57 = vmatpush1.xpose.msra.mxu0 0.0
    %58 = vmatprep.subr.mxu0 0.0
    %59 = vmatpush1.xpose.msra.mxu0 0.0
    %60 = vmatprep.subr.mxu0 0.0
    %61 = vmatpush1.xpose.msra.mxu0 0.0
    %62 = vmatprep.subr.mxu0 0.0
    %63 = vmatpush1.xpose.msra.mxu0 0.0
    %64 = vmatprep.subr.mxu0 0.0
    %65 = vmatpush1.xpose.msra.mxu0 0.0
    %66 = vmatprep.subr.mxu0 0.0
    %67 = vmatpush1.xpose.msra.mxu0 0.0
    %68 = vmatprep.subr.mxu0 0.0
    %69 = vmatpush1.xpose.msra.mxu0 0.0
    %70 = vmatprep.subr.mxu0 0.0
    %71 = vmatpush1.xpose.msra.mxu0 0.0
    %72 = vmatprep.subr.mxu0 0.0
    %73 = vmatpush1.xpose.msra.mxu0 0.0
    %74 = vmatprep.subr.mxu0 0.0
    %75 = vmatpush1.xpose.msra.mxu0 0.0
    %76 = vmatprep.subr.mxu0 0.0
    %77 = vmatpush1.xpose.msra.mxu0 %v46
    %78 = vmatprep.subr.mxu0 0.0
    %79 = vmatpush1.xpose.msra.mxu0 %v43
    %80 = vmatprep.subr.mxu0 0.0
    %81 = vmatpush2.xpose.msra.mxu0 0.0
    %82 = vmatprep.subr.mxu0 0.0
    %83 = vmatpush2.xpose.msra.mxu0 0.0
    %84 = vmatprep.subr.mxu0 0.0
    %85 = vmatpush2.xpose.msra.mxu0 0.0
    %86 = vmatprep.subr.mxu0 0.0
    %87 = vmatpush2.xpose.msra.mxu0 0.0
    %88 = vmatprep.subr.mxu0 0.0
    %89 = vmatpush2.xpose.msra.mxu0 0.0
    %90 = vmatprep.subr.mxu0 0.0
    %91 = vmatpush2.xpose.msra.mxu0 0.0
    %92 = vmatprep.subr.mxu0 0.0
    %93 = vmatpush2.xpose.msra.mxu0 0.0
    %94 = vmatprep.subr.mxu0 0.0
    %95 = vmatpush2.xpose.msra.mxu0 0.0
    %96 = vmatprep.subr.mxu0 0.0
    %97 = vmatpush2.xpose.msra.mxu0 0.0
    %98 = vmatprep.subr.mxu0 0.0
    %99 = vmatpush2.xpose.msra.mxu0 0.0
    %100 = vmatprep.subr.mxu0 0.0
    %101 = vmatpush2.xpose.msra.mxu0 0.0
    %102 = vmatprep.subr.mxu0 0.0
    %103 = vmatpush2.xpose.msra.mxu0 0.0
    %104 = vmatprep.subr.mxu0 0.0
    %105 = vmatpush2.xpose.msra.mxu0 0.0
    %106 = vmatprep.subr.mxu0 0.0
    %107 = vmatpush2.xpose.msra.mxu0 0.0
    %108 = vmatprep.subr.mxu0 0.0
    %109 = vmatpush2.xpose.msra.mxu0 0.0
    %110 = vmatprep.subr.mxu0 0.0
    %111 = vmatpush2.xpose.msra.mxu0 0.0
    %112 = vmatprep.mubr.f32.mxu0 0.0
    %113 = vmatmul.mubr.f32.gmra.mxu0 %v40
    %v114 = vpop.f32.mrf.mxu0
    %v115 = vadd.f32 %v36, %v114
    %v116 = vpop.f32.mrf.mxu0
    %117 = vdwg.mxu0
    %vm118 = vcmask 130048
    %119 = vst.msk [vmem:[%s3] sm:$0xff] %vm118, %v115
    // Predicated region
    $region18: #{apply.1} parent=1 // pred_check
      _
    $region19: #{apply.1} parent=1 // pred_check_branch
      %121 = sbr.rel (0) target = $region21
    $region20: #{apply.1} parent=1 // pred_region
      _
    $region21: #{apply.1} parent=1 // pred_fallthru
      _
    // Predicated region
    $region22: #{apply.1} parent=1 // pred_check
      _
    $region23: #{apply.1} parent=1 // pred_check_branch
      %123 = sbr.rel (0) target = $region25
    $region24: #{apply.1} parent=1 // pred_region
      _
    $region25: #{apply.1} parent=1 // pred_fallthru
      _
    %124 = vsyncpa [#allocation3], 1

</llo_original>
